<compile_context>
chip_gen: v6e
topology: v6e:2x2x1
jax: 0.10.0
libtpu: 0.0.40
codegen_flags: <defaults>
</compile_context>

<pallas_src>
import functools

import jax
import jax.numpy as jnp
from jax.experimental import pallas as pl
from jax.experimental.pallas import tpu as pltpu


def _round_up(x, m):
    return ((x + m - 1) // m) * m


def _policy_kernel(x_ref, w1_ref, b1_ref, w2_ref, b2_ref, o_ref):
    # Layer 1: Linear(n_states, 64) + ReLU. MXU matmul, f32 accumulation.
    h = jnp.dot(x_ref[...], w1_ref[...], preferred_element_type=jnp.float32)
    h = jnp.maximum(h + b1_ref[...], 0.0)          # b1 is (1, H), broadcasts over batch

    # Layer 2: Linear(64, n_actions). No padded lanes -> no mask needed.
    logits = jnp.dot(h.astype(w2_ref.dtype), w2_ref[...],
                     preferred_element_type=jnp.float32)
    logits = logits + b2_ref[...]

    # Numerically stable softmax over the (unpadded) action axis.
    m = jnp.max(logits, axis=-1, keepdims=True)
    e = jnp.exp(logits - m)
    denom = jnp.sum(e, axis=-1, keepdims=True)
    o_ref[...] = (e * pl.reciprocal(denom, approx=True)).astype(o_ref.dtype)


@functools.partial(jax.jit, static_argnames=("block_b",))
def reinforce_forward(x, w1, b1, w2, b2, *, block_b=2048):
    """Pallas forward pass of REINFORCEAgent.policy_network.

    x:  (B, n_states) or (n_states,)
    w1: (n_states, 64)      b1: (1, 64)
    w2: (64, n_actions)     b2: (1, n_actions)
    returns (B, n_actions) float32 action probabilities (or (n_actions,) for 1-D x).
    """
    squeeze = x.ndim == 1
    if squeeze:
        x = x[None, :]
    B, n_states = x.shape
    hidden = w1.shape[1]
    n_actions = w2.shape[1]

    mm_dtype = w1.dtype                 # matmul stream dtype set by prepare_params
    x = x.astype(mm_dtype)

    # Batch tile: aim for >= 2 tiles (v7x megacore) but never exceed block_b
    # (big tiles amortize the ~0.35 us per-grid-step overhead). Round rows to
    # the sublane packing of the stream dtype.
    sub = 16 if mm_dtype == jnp.bfloat16 else 8
    TB = min(block_b, _round_up(pl.cdiv(B, 2), sub))
    if TB >= B:
        TB = B                          # single tile == full batch dim (always legal)
    grid = (pl.cdiv(B, TB),)            # ragged tail handled by Pallas (OOB writes dropped)

    def _nbytes(a):
        return a.size * a.dtype.itemsize

    cost = pl.CostEstimate(
        flops=2 * B * (n_states * hidden + hidden * n_actions) + 8 * B * n_actions,
        transcendentals=B * n_actions,
        bytes_accessed=_nbytes(x) + _nbytes(w1) + _nbytes(b1) + _nbytes(w2)
                        + _nbytes(b2) + B * n_actions * 4,
    )

    out = pl.pallas_call(
        _policy_kernel,
        out_shape=jax.ShapeDtypeStruct((B, n_actions), jnp.float32),
        grid=grid,
        in_specs=[
            # Streamed activations: (TB, n_states) tiles, unpadded lanes.
            pl.BlockSpec((TB, n_states), lambda i: (i, 0)),
            # Tiny weights/biases: VMEM-resident across the whole grid.
            pl.BlockSpec((n_states, hidden), lambda i: (0, 0)),
            pl.BlockSpec((1, hidden), lambda i: (0, 0)),
            pl.BlockSpec((hidden, n_actions), lambda i: (0, 0)),
            pl.BlockSpec((1, n_actions), lambda i: (0, 0)),
        ],
        out_specs=pl.BlockSpec((TB, n_actions), lambda i: (i, 0)),
        compiler_params=pltpu.CompilerParams(
            dimension_semantics=("parallel",),   # shard batch tiles across TCs (v7x)
        ),
        cost_estimate=cost,
    )(x, w1, b1, w2, b2)

    return out[0] if squeeze else out


def init_params(key, n_states, n_actions, hidden=64):
    """Deterministic Xavier-uniform weights, zero biases (mirrors torch __init__)."""
    k1, k2 = jax.random.split(key)

    def xavier_uniform(k, fan_in, fan_out):
        limit = jnp.sqrt(6.0 / (fan_in + fan_out))
        # stored [in, out]; same distribution as torch's xavier_uniform_ on [out, in]
        return jax.random.uniform(k, (fan_in, fan_out), jnp.float32,
                                  minval=-limit, maxval=limit)

    w1 = xavier_uniform(k1, n_states, hidden)
    b1 = jnp.zeros((1, hidden), jnp.float32)
    w2 = xavier_uniform(k2, hidden, n_actions)
    b2 = jnp.zeros((1, n_actions), jnp.float32)
    return w1, b1, w2, b2


def prepare_params(w1, b1, w2, b2, *, use_bf16=True):
    """One-time cast of matmul weights (hoisted out of the per-step hot path).

    bf16 halves the dominant HBM activation read; biases / post-matmul math
    stay f32 (v5e has no bf16 VPU/EUP, all three MXUs are bf16-native).
    """
    dt = jnp.bfloat16 if use_bf16 else jnp.float32
    return (w1.astype(dt), b1.astype(jnp.float32),
            w2.astype(dt), b2.astype(jnp.float32))


def reference_forward(x, w1, b1, w2, b2):
    h = jnp.maximum(x @ w1 + b1, 0.0)
    logits = h @ w2 + b2
    return jax.nn.softmax(logits, axis=-1)


# TODO(synk): select_action (multinomial sampling), the Adam policy update and the
# env evaluation loop are host-side / training logic, not part of the forward pass,
# so they are not implemented as kernels.

if __name__ == "__main__":
    key = jax.random.PRNGKey(0)
    n_states, n_actions = 4, 2          # CartPole-like sizes
    kx, kp, kx2 = jax.random.split(key, 3)
    w1, b1, w2, b2 = init_params(kp, n_states, n_actions)
    params_f32 = (w1, b1, w2, b2)
    params_bf16 = prepare_params(*params_f32, use_bf16=True)

    # 1) select_action-sized batch, exact f32 matmul path, single tile.
    x_small = jax.random.normal(kx, (2, n_states), jnp.float32)
    probs = jax.block_until_ready(reinforce_forward(x_small, *params_f32))
    ref = reference_forward(x_small, *params_f32)
    assert probs.shape == (2, n_actions)
    assert jnp.allclose(probs, ref, atol=5e-3, rtol=5e-3), "mismatch vs reference (f32)"
    assert jnp.allclose(jnp.sum(probs, axis=-1), 1.0, atol=5e-3), "softmax rows != 1"

    # 2) rollout-sized batch: multi-tile grid with a ragged tail + bf16 streams.
    x_big = jax.random.normal(kx2, (300, n_states), jnp.float32)
    probs_big = jax.block_until_ready(
        reinforce_forward(x_big, *params_bf16, block_b=128))
    ref_big = reference_forward(x_big, *params_f32)
    assert probs_big.shape == (300, n_actions)
    assert jnp.allclose(probs_big, ref_big, atol=3e-2, rtol=3e-2), "mismatch (bf16)"
    assert jnp.allclose(jnp.sum(probs_big, axis=-1), 1.0, atol=5e-3), "softmax rows != 1"

    print("KERNEL_OK")
</pallas_src>

<mosaic_0001>
module attributes {stable_mosaic.version = 11 : i64} {
  func.func @_policy_kernel(%arg0: i32, %arg1: memref<2x4xf32, #tpu.memory_space<vmem>>, %arg2: memref<4x64xf32, #tpu.memory_space<vmem>>, %arg3: memref<1x64xf32, #tpu.memory_space<vmem>>, %arg4: memref<64x2xf32, #tpu.memory_space<vmem>>, %arg5: memref<1x2xf32, #tpu.memory_space<vmem>>, %arg6: memref<2x2xf32, #tpu.memory_space<vmem>>) attributes {dimension_semantics = [#tpu.dimension_semantics<parallel>], iteration_bounds = array<i64: 1>, scalar_prefetch = 0 : i64, scratch_operands = 0 : i64, tpu.core_type = #tpu.core_type<tc>, window_params = [{transform_indices = @transform_0, window_bounds = array<i64: 2, 4>}, {pipeline_mode = #tpu.pipeline_mode<synchronous>, transform_indices = @transform_1, window_bounds = array<i64: 4, 64>}, {pipeline_mode = #tpu.pipeline_mode<synchronous>, transform_indices = @transform_2, window_bounds = array<i64: 1, 64>}, {pipeline_mode = #tpu.pipeline_mode<synchronous>, transform_indices = @transform_3, window_bounds = array<i64: 64, 2>}, {pipeline_mode = #tpu.pipeline_mode<synchronous>, transform_indices = @transform_4, window_bounds = array<i64: 1, 2>}, {transform_indices = @transform_5, window_bounds = array<i64: 2, 2>}]} {
    %c0 = arith.constant 0 : index
    %c0_0 = arith.constant 0 : index
    %0 = vector.load %arg1[%c0, %c0_0] : memref<2x4xf32, #tpu.memory_space<vmem>>, vector<2x4xf32>
    %c0_1 = arith.constant 0 : index
    %c0_2 = arith.constant 0 : index
    %1 = vector.load %arg2[%c0_1, %c0_2] : memref<4x64xf32, #tpu.memory_space<vmem>>, vector<4x64xf32>
    %cst = arith.constant dense<0.000000e+00> : vector<2x64xf32>
    %2 = tpu.matmul %0, %1, %cst {dimension_numbers = #tpu.dot_dimension_numbers<[1], [0], [0], [1], [0, 0, 1, 1], [], []>} : vector<2x4xf32>, vector<4x64xf32>, vector<2x64xf32> -> vector<2x64xf32>
    %c0_3 = arith.constant 0 : index
    %c0_4 = arith.constant 0 : index
    %3 = vector.load %arg3[%c0_3, %c0_4] : memref<1x64xf32, #tpu.memory_space<vmem>>, vector<1x64xf32>
    %4 = vector.broadcast %3 : vector<1x64xf32> to vector<2x64xf32>
    %5 = arith.addf %2, %4 : vector<2x64xf32>
    %cst_5 = arith.constant 0.000000e+00 : f32
    %6 = vector.broadcast %cst_5 : f32 to vector<2x64xf32>
    %7 = arith.maximumf %5, %6 : vector<2x64xf32>
    %c0_6 = arith.constant 0 : index
    %c0_7 = arith.constant 0 : index
    %8 = vector.load %arg4[%c0_6, %c0_7] : memref<64x2xf32, #tpu.memory_space<vmem>>, vector<64x2xf32>
    %cst_8 = arith.constant dense<0.000000e+00> : vector<2x2xf32>
    %9 = tpu.matmul %7, %8, %cst_8 {dimension_numbers = #tpu.dot_dimension_numbers<[1], [0], [0], [1], [0, 0, 1, 1], [], []>} : vector<2x64xf32>, vector<64x2xf32>, vector<2x2xf32> -> vector<2x2xf32>
    %c0_9 = arith.constant 0 : index
    %c0_10 = arith.constant 0 : index
    %10 = vector.load %arg5[%c0_9, %c0_10] : memref<1x2xf32, #tpu.memory_space<vmem>>, vector<1x2xf32>
    %11 = vector.broadcast %10 : vector<1x2xf32> to vector<2x2xf32>
    %12 = arith.addf %9, %11 : vector<2x2xf32>
    %cst_11 = arith.constant dense<0xFF800000> : vector<2xf32>
    %13 = vector.multi_reduction <maximumf>, %12, %cst_11 [1] : vector<2x2xf32> to vector<2xf32>
    %14 = vector.shape_cast %13 : vector<2xf32> to vector<2x1xf32>
    %15 = vector.broadcast %14 : vector<2x1xf32> to vector<2x2xf32>
    %16 = arith.subf %12, %15 : vector<2x2xf32>
    %17 = math.exp %16 : vector<2x2xf32>
    %cst_12 = arith.constant dense<0.000000e+00> : vector<2xf32>
    %18 = vector.multi_reduction <add>, %17, %cst_12 [1] : vector<2x2xf32> to vector<2xf32>
    %19 = vector.shape_cast %18 : vector<2xf32> to vector<2x1xf32>
    %20 = tpu.reciprocal %19 {approx = true} : vector<2x1xf32> -> vector<2x1xf32>
    %21 = vector.broadcast %20 : vector<2x1xf32> to vector<2x2xf32>
    %22 = arith.mulf %17, %21 : vector<2x2xf32>
    %c0_13 = arith.constant 0 : index
    %c0_14 = arith.constant 0 : index
    %23 = vector.load %arg6[%c0_13, %c0_14] : memref<2x2xf32, #tpu.memory_space<vmem>>, vector<2x2xf32>
    tpu.vector_store %arg6[%c0_13, %c0_14], %22 {strides = array<i32>} : memref<2x2xf32, #tpu.memory_space<vmem>>, vector<2x2xf32>,
    return
  }
  func.func @transform_0(%arg0: i32) -> (i32, i32) {
    %c0_i32 = arith.constant 0 : i32
    %c0_i32_0 = arith.constant 0 : i32
    return %arg0, %c0_i32 : i32, i32
  }
  func.func @transform_1(%arg0: i32) -> (i32, i32) {
    %c0_i32 = arith.constant 0 : i32
    %c0_i32_0 = arith.constant 0 : i32
    %c0_i32_1 = arith.constant 0 : i32
    return %c0_i32, %c0_i32_0 : i32, i32
  }
  func.func @transform_2(%arg0: i32) -> (i32, i32) {
    %c0_i32 = arith.constant 0 : i32
    %c0_i32_0 = arith.constant 0 : i32
    %c0_i32_1 = arith.constant 0 : i32
    return %c0_i32, %c0_i32_0 : i32, i32
  }
  func.func @transform_3(%arg0: i32) -> (i32, i32) {
    %c0_i32 = arith.constant 0 : i32
    %c0_i32_0 = arith.constant 0 : i32
    %c0_i32_1 = arith.constant 0 : i32
    return %c0_i32, %c0_i32_0 : i32, i32
  }
  func.func @transform_4(%arg0: i32) -> (i32, i32) {
    %c0_i32 = arith.constant 0 : i32
    %c0_i32_0 = arith.constant 0 : i32
    %c0_i32_1 = arith.constant 0 : i32
    return %c0_i32, %c0_i32_0 : i32, i32
  }
  func.func @transform_5(%arg0: i32) -> (i32, i32) {
    %c0_i32 = arith.constant 0 : i32
    %c0_i32_0 = arith.constant 0 : i32
    return %arg0, %c0_i32 : i32, i32
  }
}

</mosaic_0001>

<llo_original>
// kernel: reinforce_forward.1
$region0: #{reinforce_forward.1}
  #allocation0 [shape = 'u32[]', space=smem, size = 0x4, offset = 0x4, fixed_abs, tag = 'smem constant byte address 0x4 - core index']
  #allocation1 [shape = 'u32[144,128]{1,0:T(1,128)}', space=vmem, size = 0x12000, scoped, tag = 'internal scratch']
  %s0 = inlined_call_operand.vmem [shape: f32[2,4], index: 0, kind: input, shape index: {}]
  %s1 = inlined_call_operand.vmem [shape: f32[4,64], index: 1, kind: input, shape index: {}]
  %s2 = inlined_call_operand.vmem [shape: f32[1,64], index: 2, kind: input, shape index: {}]
  %s3 = inlined_call_operand.vmem [shape: f32[64,2], index: 3, kind: input, shape index: {}]
  %s4 = inlined_call_operand.vmem [shape: f32[1,2], index: 4, kind: input, shape index: {}]
  %s5 = inlined_call_operand.hbm [shape: f32[2,2], index: 5, kind: output, shape index: {}]
  %s6 = sld [smem:[#allocation0]]
  $region30: #{reinforce_forward.1} parent=0
    _
  %s8 = ssub.s32 1, %s6
  %s9 = scalar_select 0, %s8, %s6
  $region1: #{reinforce_forward.1} parent=0
    #allocation2 [shape = 'u8[1024]{0}', space=vmem, size = 0x400, scoped, tag = 'output window, operand 0, single buffered']
    #allocation3 [shape = 's32[1]{0}', space=sflag, size = 0x4, scoped, tag = 'scoped memory for reinforce_forward.1']
    %10 = vsyncpa [#allocation3], 0
    // Predicated region
    $region2: #{reinforce_forward.1} parent=1 // pred_check
      _
    $region3: #{reinforce_forward.1} parent=1 // pred_check_branch
      %12 = sbr.rel (0) target = $region5
    $region4: #{reinforce_forward.1} parent=1 // pred_region
      _
    $region5: #{reinforce_forward.1} parent=1 // pred_fallthru
      _
    // Predicated region
    $region6: #{reinforce_forward.1} parent=1 // pred_check
      _
    $region7: #{reinforce_forward.1} parent=1 // pred_check_branch
      %14 = sbr.rel (0) target = $region9
    $region8: #{reinforce_forward.1} parent=1 // pred_region
      _
    $region9: #{reinforce_forward.1} parent=1 // pred_fallthru
      _
    // Predicated region
    $region10: #{reinforce_forward.1} parent=1 // pred_check
      _
    $region11: #{reinforce_forward.1} parent=1 // pred_check_branch
      %16 = sbr.rel (0) target = $region13
    $region12: #{reinforce_forward.1} parent=1 // pred_region
      _
    $region13: #{reinforce_forward.1} parent=1 // pred_fallthru
      _
    // Predicated region
    $region14: #{reinforce_forward.1} parent=1 // pred_check
      _
    $region15: #{reinforce_forward.1} parent=1 // pred_check_branch
      %18 = sbr.rel (0) target = $region17
    $region16: #{reinforce_forward.1} parent=1 // pred_region
      _
    $region17: #{reinforce_forward.1} parent=1 // pred_fallthru
      _
    // Predicated region
    $region18: #{reinforce_forward.1} parent=1 // pred_check
      _
    $region19: #{reinforce_forward.1} parent=1 // pred_check_branch
      %20 = sbr.rel (0) target = $region21
    $region20: #{reinforce_forward.1} parent=1 // pred_region
      _
    $region21: #{reinforce_forward.1} parent=1 // pred_fallthru
      _
    %v21 = vld [vmem:[%s0] sm:$0x3]
    %v22 = vld [vmem:[%s1] sm:$0xf]
    %v23 = vld [vmem:[%s2] sm:$0x1]
    %v25 = vlaneseq
    %v26 = vshrl.u32 %v25, 7
    %v27 = vsub.s32 0, %v26
    %v28 = vrot.slane %v23, %v27
    %vm30 = vcmask 31744
    %v32 = vsel %vm30, %v21, 0
    %vm34 = vcmask 1043456
    %v36 = vsel %vm34, %v22, 0
    %38 = vmatprep.subr.mxu0 0.0
    %39 = vmatpush1.msra.mxu0 0.0
    %40 = vmatprep.subr.mxu0 0.0
    %41 = vmatpush1.msra.mxu0 0.0
    %42 = vmatprep.subr.mxu0 0.0
    %43 = vmatpush1.msra.mxu0 0.0
    %44 = vmatprep.subr.mxu0 0.0
    %45 = vmatpush1.msra.mxu0 0.0
    %46 = vmatprep.subr.mxu0 0.0
    %47 = vmatpush1.msra.mxu0 0.0
    %48 = vmatprep.subr.mxu0 0.0
    %49 = vmatpush1.msra.mxu0 0.0
    %50 = vmatprep.subr.mxu0 0.0
    %51 = vmatpush1.msra.mxu0 0.0
    %52 = vmatprep.subr.mxu0 0.0
    %53 = vmatpush1.msra.mxu0 0.0
    %54 = vmatprep.subr.mxu0 0.0
    %55 = vmatpush1.msra.mxu0 0.0
    %56 = vmatprep.subr.mxu0 0.0
    %57 = vmatpush1.msra.mxu0 0.0
    %58 = vmatprep.subr.mxu0 0.0
    %59 = vmatpush1.msra.mxu0 0.0
    %60 = vmatprep.subr.mxu0 0.0
    %61 = vmatpush1.msra.mxu0 0.0
    %62 = vmatprep.subr.mxu0 0.0
    %63 = vmatpush1.msra.mxu0 0.0
    %64 = vmatprep.subr.mxu0 0.0
    %65 = vmatpush1.msra.mxu0 0.0
    %66 = vmatprep.subr.mxu0 0.0
    %67 = vmatpush1.msra.mxu0 0.0
    %68 = vmatprep.subr.mxu0 0.0
    %69 = vmatpush1.msra.mxu0 %v36
    %70 = vmatprep.subr.mxu0 0.0
    %71 = vmatpush2.msra.mxu0 0.0
    %72 = vmatprep.subr.mxu0 0.0
    %73 = vmatpush2.msra.mxu0 0.0
    %74 = vmatprep.subr.mxu0 0.0
    %75 = vmatpush2.msra.mxu0 0.0
    %76 = vmatprep.subr.mxu0 0.0
    %77 = vmatpush2.msra.mxu0 0.0
    %78 = vmatprep.subr.mxu0 0.0
    %79 = vmatpush2.msra.mxu0 0.0
    %80 = vmatprep.subr.mxu0 0.0
    %81 = vmatpush2.msra.mxu0 0.0
    %82 = vmatprep.subr.mxu0 0.0
    %83 = vmatpush2.msra.mxu0 0.0
    %84 = vmatprep.subr.mxu0 0.0
    %85 = vmatpush2.msra.mxu0 0.0
    %86 = vmatprep.subr.mxu0 0.0
    %87 = vmatpush2.msra.mxu0 0.0
    %88 = vmatprep.subr.mxu0 0.0
    %89 = vmatpush2.msra.mxu0 0.0
    %90 = vmatprep.subr.mxu0 0.0
    %91 = vmatpush2.msra.mxu0 0.0
    %92 = vmatprep.subr.mxu0 0.0
    %93 = vmatpush2.msra.mxu0 0.0
    %94 = vmatprep.subr.mxu0 0.0
    %95 = vmatpush2.msra.mxu0 0.0
    %96 = vmatprep.subr.mxu0 0.0
    %97 = vmatpush2.msra.mxu0 0.0
    %98 = vmatprep.subr.mxu0 0.0
    %99 = vmatpush2.msra.mxu0 0.0
    %100 = vmatprep.subr.mxu0 0.0
    %101 = vmatpush2.msra.mxu0 0.0
    %102 = vmatprep.mubr.f32.mxu0 0.0
    %103 = vmatmul.mubr.f32.gmra.mxu0 %v32
    %v104 = vpop.f32.mrf.mxu0
    %v105 = vadd.f32 %v28, %v104
    %v106 = vpop.f32.mrf.mxu0
    %107 = vdwg.mxu0
    %v108 = vmax.f32 %v105, 0.0
    %v109 = vld [vmem:[%s3] sm:$0xff]
    %v110 = vld [vmem:[%s3 + $0x8] sm:$0xff]
    %v111 = vld [vmem:[%s3 + $0x10] sm:$0xff]
    %v112 = vld [vmem:[%s3 + $0x18] sm:$0xff]
    %v113 = vld [vmem:[%s3 + $0x20] sm:$0xff]
    %v114 = vld [vmem:[%s3 + $0x28] sm:$0xff]
    %v115 = vld [vmem:[%s3 + $0x30] sm:$0xff]
    %v116 = vld [vmem:[%s3 + $0x38] sm:$0xff]
    %v117 = vld [vmem:[%s4] sm:$0x1]
    %v119 = vlaneseq
    %v120 = vshrl.u32 %v119, 7
    %v121 = vsub.s32 0, %v120
    %v122 = vrot.slane %v117, %v121
    %vm124 = vcmask 523264
    %v126 = vsel %vm124, %v108, 0
    %128 = vmatprep.subr.mxu0 0.0
    %129 = vmatpush1.msra.mxu0 0.0
    %130 = vmatprep.subr.mxu0 0.0
    %131 = vmatpush1.msra.mxu0 0.0
    %132 = vmatprep.subr.mxu0 0.0
    %133 = vmatpush1.msra.mxu0 0.0
    %134 = vmatprep.subr.mxu0 0.0
    %135 = vmatpush1.msra.mxu0 0.0
    %136 = vmatprep.subr.mxu0 0.0
    %137 = vmatpush1.msra.mxu0 0.0
    %138 = vmatprep.subr.mxu0 0.0
    %139 = vmatpush1.msra.mxu0 0.0
    %140 = vmatprep.subr.mxu0 0.0
    %141 = vmatpush1.msra.mxu0 0.0
    %142 = vmatprep.subr.mxu0 0.0
    %143 = vmatpush1.msra.mxu0 0.0
    %144 = vmatprep.subr.mxu0 0.0
    %145 = vmatpush1.msra.mxu0 %v116
    %146 = vmatprep.subr.mxu0 0.0
    %147 = vmatpush1.msra.mxu0 %v115
    %148 = vmatprep.subr.mxu0 0.0
    %149 = vmatpush1.msra.mxu0 %v114
    %150 = vmatprep.subr.mxu0 0.0
    %151 = vmatpush1.msra.mxu0 %v113
    %152 = vmatprep.subr.mxu0 0.0
    %153 = vmatpush1.msra.mxu0 %v112
    %154 = vmatprep.subr.mxu0 0.0
    %155 = vmatpush1.msra.mxu0 %v111
    %156 = vmatprep.subr.mxu0 0.0
    %157 = vmatpush1.msra.mxu0 %v110
    %158 = vmatprep.subr.mxu0 0.0
    %159 = vmatpush1.msra.mxu0 %v109
    %160 = vmatprep.subr.mxu0 0.0
    %161 = vmatpush2.msra.mxu0 0.0
    %162 = vmatprep.subr.mxu0 0.0
    %163 = vmatpush2.msra.mxu0 0.0
    %164 = vmatprep.subr.mxu0 0.0
    %165 = vmatpush2.msra.mxu0 0.0
    %166 = vmatprep.subr.mxu0 0.0
    %167 = vmatpush2.msra.mxu0 0.0
    %168 = vmatprep.subr.mxu0 0.0
    %169 = vmatpush2.msra.mxu0 0.0
    %170 = vmatprep.subr.mxu0 0.0
    %171 = vmatpush2.msra.mxu0 0.0
    %172 = vmatprep.subr.mxu0 0.0
    %173 = vmatpush2.msra.mxu0 0.0
    %174 = vmatprep.subr.mxu0 0.0
    %175 = vmatpush2.msra.mxu0 0.0
    %176 = vmatprep.subr.mxu0 0.0
    %177 = vmatpush2.msra.mxu0 0.0
    %178 = vmatprep.subr.mxu0 0.0
    %179 = vmatpush2.msra.mxu0 0.0
    %180 = vmatprep.subr.mxu0 0.0
    %181 = vmatpush2.msra.mxu0 0.0
    %182 = vmatprep.subr.mxu0 0.0
    %183 = vmatpush2.msra.mxu0 0.0
    %184 = vmatprep.subr.mxu0 0.0
    %185 = vmatpush2.msra.mxu0 0.0
    %186 = vmatprep.subr.mxu0 0.0
    %187 = vmatpush2.msra.mxu0 0.0
    %188 = vmatprep.subr.mxu0 0.0
    %189 = vmatpush2.msra.mxu0 0.0
    %190 = vmatprep.subr.mxu0 0.0
    %191 = vmatpush2.msra.mxu0 0.0
    %192 = vmatprep.mubr.f32.mxu0 0.0
    %193 = vmatmul.mubr.f32.gmra.mxu0 %v126
    %v194 = vpop.f32.mrf.mxu0
    %v195 = vadd.f32 %v122, %v194
    %v196 = vpop.f32.mrf.mxu0
    %197 = vdwg.mxu0
    %vm198 = vcmask 9216
    %v199 = vsel %vm198, %v195, -inf
    %200 = vmax.xlane.f32.xlu0 %v199
    %v201 = vpop.xlane.xlu0 %200
    %v202 = vsub.f32 %v195, %v201
    %v203 = vmul.f32 %v202, 1.442695
    %v204 = vpow.pop %v203
    %v205 = vsel %vm198, %v204, 0.0
    %206 = vadd.xlane.f32.xlu0 %v205
    %v207 = vpop.xlane.xlu0 %206
    %v208 = vrcp.pop %v207
    %v209 = vmul.f32 %v204, %v208
    %210 = vst.msk [vmem:[#allocation2] sm:$0x3] %vm198, %v209
    // Predicated region
    $region22: #{reinforce_forward.1} parent=1 // pred_check
      _
    $region23: #{reinforce_forward.1} parent=1 // pred_check_branch
      %212 = sbr.rel (0) target = $region25
    $region24: #{reinforce_forward.1} parent=1 // pred_region
      %s214 = ssub.s32 32, 32
      %215 = vsyncadd [#allocation3], %s214
      %s217 = sshll.u32 [#allocation2], 4
      %s218 = int_to_ptr.vmem [resolvable:$true] %s217
      %220 = dma.vmem_to_hbm [thread:$0]  %s218, 32, %s5, [#allocation3]
    $region25: #{reinforce_forward.1} parent=1 // pred_fallthru
      _
    // Predicated region
    $region26: #{reinforce_forward.1} parent=1 // pred_check
      _
    $region27: #{reinforce_forward.1} parent=1 // pred_check_branch
      %222 = sbr.rel (0) target = $region29
    $region28: #{reinforce_forward.1} parent=1 // pred_region
      %223 = dma.done [#allocation3], 32
    $region29: #{reinforce_forward.1} parent=1 // pred_fallthru
      _
    %224 = vsyncpa [#allocation3], 1

</llo_original>
